<compile_context>
chip_gen: v6e
topology: v6e:2x2x1
jax: 0.10.0
libtpu: 0.0.40
codegen_flags: <defaults>
</compile_context>

<pallas_src>
import jax
import jax.numpy as jnp
from jax.experimental import pallas as pl
from jax.experimental.pallas import tpu as pltpu

WINDOW_SIZE = 5
LANE = 128


def _round_up(x, m):
    return (x + m - 1) // m * m


def window_mlp_kernel(x_ref, w1_ref, b1_ref, w2_ref, b2_ref, out_ref):
    # x_ref: [TILE_B, K]   (K = WINDOW_SIZE * embed_dim, already flattened)
    # w1_ref: [K, Hp]  b1_ref: [1, Hp]  w2_ref: [Hp, Lp]  b2_ref: [1, Lp]
    h = jnp.tanh(
        jnp.dot(x_ref[...], w1_ref[...], preferred_element_type=jnp.float32)
        + b1_ref[...])                                       # [TILE_B, Hp]
    # TODO(synk): nn.Dropout(0.25) is identity at inference; training-mode
    # dropout (pltpu.prng_seed + pltpu.stateful_bernoulli) not implemented.
    out_ref[...] = (
        jnp.dot(h, w2_ref[...], preferred_element_type=jnp.float32)
        + b2_ref[...])                                       # [TILE_B, Lp]


def window_model_forward(x, params):
    """x: int32 [B, 3, WINDOW_SIZE].  Returns float32 [B, labels_dim]."""
    e_word, e_pref, e_suff, w1, b1, w2, b2 = (
        params["E_word"], params["E_pref"], params["E_suff"],
        params["W1"], params["b1"], params["W2"], params["b2"])

    B = x.shape[0]
    D = e_word.shape[1]
    K = WINDOW_SIZE * D
    H = w1.shape[1]
    L = w2.shape[1]

    words = x[:, 0, :]
    prefixes = x[:, 1, :]
    suffixes = x[:, 2, :]

    # Glue (XLA): data-dependent gathers, 3-way sum, and flatten fused here
    # so the kernel sees a single lane-friendly [B, K] activation stream.
    # TODO(synk): for very large batches the gather itself could be moved
    # in-kernel (scalar-prefetched ids + resident tables / jnp.take) to cut
    # HBM traffic another ~8x; kept in XLA here for lowering robustness.
    flat = (e_word[words] + e_pref[prefixes]
            + e_suff[suffixes]).reshape(B, K).astype(jnp.float32)

    # Lane-dense padding of hidden / label widths (zero-pad -> exact math
    # for the valid columns; padded h columns are tanh(0)=0 and hit zero
    # rows of W2, padded output columns are sliced away).
    Hp = _round_up(max(H, 1), LANE)
    Lp = _round_up(max(L, 1), LANE)
    w1_p = jnp.zeros((K, Hp), jnp.float32).at[:, :H].set(w1)
    b1_p = jnp.zeros((1, Hp), jnp.float32).at[:, :H].set(b1.reshape(1, H))
    w2_p = jnp.zeros((Hp, Lp), jnp.float32).at[:H, :L].set(w2)
    b2_p = jnp.zeros((1, Lp), jnp.float32).at[:, :L].set(b2.reshape(1, L))

    # Batch tiling (multiple of 8 sublanes; large tiles for HBM roofline).
    TILE_B = min(512, _round_up(B, 8))
    B_pad = _round_up(B, TILE_B)
    if B_pad != B:
        flat = jnp.zeros((B_pad, K), jnp.float32).at[:B].set(flat)

    grid = (B_pad // TILE_B,)
    out_p = pl.pallas_call(
        window_mlp_kernel,
        out_shape=jax.ShapeDtypeStruct((B_pad, Lp), jnp.float32),
        grid=grid,
        in_specs=[
            pl.BlockSpec((TILE_B, K), lambda i: (i, 0)),   # activations
            pl.BlockSpec((K, Hp), lambda i: (0, 0)),       # W1 (resident)
            pl.BlockSpec((1, Hp), lambda i: (0, 0)),       # b1 (resident)
            pl.BlockSpec((Hp, Lp), lambda i: (0, 0)),      # W2 (resident)
            pl.BlockSpec((1, Lp), lambda i: (0, 0)),       # b2 (resident)
        ],
        out_specs=pl.BlockSpec((TILE_B, Lp), lambda i: (i, 0)),
        compiler_params=pltpu.CompilerParams(
            dimension_semantics=("parallel",),
            vmem_limit_bytes=32 * 1024 * 1024),
    )(flat, w1_p, b1_p, w2_p, b2_p)

    return out_p[:B, :L]


def init_params(key, vocab_size, pref_size, suff_size, embed_dim, hidden_dim,
                labels_dim):
    ks = jax.random.split(key, 7)
    scale = 0.1
    return {
        "E_word": scale * jax.random.normal(ks[0], (vocab_size, embed_dim),
                                            jnp.float32),
        "E_pref": scale * jax.random.normal(ks[1], (pref_size, embed_dim),
                                            jnp.float32),
        "E_suff": scale * jax.random.normal(ks[2], (suff_size, embed_dim),
                                            jnp.float32),
        # weights stored [in, out] (transposed vs. torch nn.Linear)
        "W1": scale * jax.random.normal(
            ks[3], (embed_dim * WINDOW_SIZE, hidden_dim), jnp.float32),
        "b1": scale * jax.random.normal(ks[4], (1, hidden_dim), jnp.float32),
        "W2": scale * jax.random.normal(
            ks[5], (hidden_dim, labels_dim), jnp.float32),
        "b2": scale * jax.random.normal(ks[6], (1, labels_dim), jnp.float32),
    }


if __name__ == "__main__":
    key = jax.random.PRNGKey(0)
    k_params, k_w, k_p, k_s = jax.random.split(key, 4)

    # small, forward-consistent shapes
    B = 8
    vocab_size, pref_size, suff_size = 100, 40, 40
    embed_dim, hidden_dim, labels_dim = 32, 32, 8

    params = init_params(k_params, vocab_size, pref_size, suff_size,
                         embed_dim, hidden_dim, labels_dim)

    words = jax.random.randint(k_w, (B, WINDOW_SIZE), 0, vocab_size, jnp.int32)
    prefixes = jax.random.randint(k_p, (B, WINDOW_SIZE), 0, pref_size,
                                  jnp.int32)
    suffixes = jax.random.randint(k_s, (B, WINDOW_SIZE), 0, suff_size,
                                  jnp.int32)
    x = jnp.stack([words, prefixes, suffixes], axis=1)   # [B, 3, W]

    out = window_model_forward(x, params)
    jax.block_until_ready(out)

    # reference check in plain JAX (eval-mode dropout = identity)
    sum_vec = (params["E_word"][words] + params["E_pref"][prefixes]
               + params["E_suff"][suffixes])
    flat = sum_vec.reshape(B, -1)
    ref = jnp.tanh(flat @ params["W1"] + params["b1"]) @ params["W2"] \
        + params["b2"]
    assert out.shape == (B, labels_dim)
    assert jnp.allclose(out, ref, atol=1e-5, rtol=1e-5)

    print("KERNEL_OK")
</pallas_src>

<mosaic_0001>
module attributes {stable_mosaic.version = 11 : i64} {
  func.func @window_mlp_kernel(%arg0: i32, %arg1: memref<8x160xf32, #tpu.memory_space<vmem>>, %arg2: memref<160x128xf32, #tpu.memory_space<vmem>>, %arg3: memref<1x128xf32, #tpu.memory_space<vmem>>, %arg4: memref<128x128xf32, #tpu.memory_space<vmem>>, %arg5: memref<1x128xf32, #tpu.memory_space<vmem>>, %arg6: memref<8x128xf32, #tpu.memory_space<vmem>>) attributes {dimension_semantics = [#tpu.dimension_semantics<parallel>], iteration_bounds = array<i64: 1>, scalar_prefetch = 0 : i64, scratch_operands = 0 : i64, tpu.core_type = #tpu.core_type<tc>, window_params = [{transform_indices = @transform_0, window_bounds = array<i64: 8, 160>}, {pipeline_mode = #tpu.pipeline_mode<synchronous>, transform_indices = @transform_1, window_bounds = array<i64: 160, 128>}, {pipeline_mode = #tpu.pipeline_mode<synchronous>, transform_indices = @transform_2, window_bounds = array<i64: 1, 128>}, {pipeline_mode = #tpu.pipeline_mode<synchronous>, transform_indices = @transform_3, window_bounds = array<i64: 128, 128>}, {pipeline_mode = #tpu.pipeline_mode<synchronous>, transform_indices = @transform_4, window_bounds = array<i64: 1, 128>}, {transform_indices = @transform_5, window_bounds = array<i64: 8, 128>}]} {
    %c0 = arith.constant 0 : index
    %c0_0 = arith.constant 0 : index
    %0 = vector.load %arg1[%c0, %c0_0] : memref<8x160xf32, #tpu.memory_space<vmem>>, vector<8x160xf32>
    %c0_1 = arith.constant 0 : index
    %c0_2 = arith.constant 0 : index
    %1 = vector.load %arg2[%c0_1, %c0_2] : memref<160x128xf32, #tpu.memory_space<vmem>>, vector<160x128xf32>
    %cst = arith.constant dense<0.000000e+00> : vector<8x128xf32>
    %2 = tpu.matmul %0, %1, %cst {dimension_numbers = #tpu.dot_dimension_numbers<[1], [0], [0], [1], [0, 0, 1, 1], [], []>} : vector<8x160xf32>, vector<160x128xf32>, vector<8x128xf32> -> vector<8x128xf32>
    %c0_3 = arith.constant 0 : index
    %c0_4 = arith.constant 0 : index
    %3 = vector.load %arg3[%c0_3, %c0_4] : memref<1x128xf32, #tpu.memory_space<vmem>>, vector<1x128xf32>
    %4 = vector.broadcast %3 : vector<1x128xf32> to vector<8x128xf32>
    %5 = arith.addf %2, %4 : vector<8x128xf32>
    %6 = math.tanh %5 : vector<8x128xf32>
    %c0_5 = arith.constant 0 : index
    %c0_6 = arith.constant 0 : index
    %7 = vector.load %arg4[%c0_5, %c0_6] : memref<128x128xf32, #tpu.memory_space<vmem>>, vector<128x128xf32>
    %cst_7 = arith.constant dense<0.000000e+00> : vector<8x128xf32>
    %8 = tpu.matmul %6, %7, %cst_7 {dimension_numbers = #tpu.dot_dimension_numbers<[1], [0], [0], [1], [0, 0, 1, 1], [], []>} : vector<8x128xf32>, vector<128x128xf32>, vector<8x128xf32> -> vector<8x128xf32>
    %c0_8 = arith.constant 0 : index
    %c0_9 = arith.constant 0 : index
    %9 = vector.load %arg5[%c0_8, %c0_9] : memref<1x128xf32, #tpu.memory_space<vmem>>, vector<1x128xf32>
    %10 = vector.broadcast %9 : vector<1x128xf32> to vector<8x128xf32>
    %11 = arith.addf %8, %10 : vector<8x128xf32>
    %c0_10 = arith.constant 0 : index
    %c0_11 = arith.constant 0 : index
    %12 = vector.load %arg6[%c0_10, %c0_11] : memref<8x128xf32, #tpu.memory_space<vmem>>, vector<8x128xf32>
    tpu.vector_store %arg6[%c0_10, %c0_11], %11 {strides = array<i32>} : memref<8x128xf32, #tpu.memory_space<vmem>>, vector<8x128xf32>,
    return
  }
  func.func @transform_0(%arg0: i32) -> (i32, i32) {
    %c0_i32 = arith.constant 0 : i32
    %c0_i32_0 = arith.constant 0 : i32
    return %arg0, %c0_i32 : i32, i32
  }
  func.func @transform_1(%arg0: i32) -> (i32, i32) {
    %c0_i32 = arith.constant 0 : i32
    %c0_i32_0 = arith.constant 0 : i32
    %c0_i32_1 = arith.constant 0 : i32
    return %c0_i32, %c0_i32_0 : i32, i32
  }
  func.func @transform_2(%arg0: i32) -> (i32, i32) {
    %c0_i32 = arith.constant 0 : i32
    %c0_i32_0 = arith.constant 0 : i32
    %c0_i32_1 = arith.constant 0 : i32
    return %c0_i32, %c0_i32_0 : i32, i32
  }
  func.func @transform_3(%arg0: i32) -> (i32, i32) {
    %c0_i32 = arith.constant 0 : i32
    %c0_i32_0 = arith.constant 0 : i32
    %c0_i32_1 = arith.constant 0 : i32
    return %c0_i32, %c0_i32_0 : i32, i32
  }
  func.func @transform_4(%arg0: i32) -> (i32, i32) {
    %c0_i32 = arith.constant 0 : i32
    %c0_i32_0 = arith.constant 0 : i32
    %c0_i32_1 = arith.constant 0 : i32
    return %c0_i32, %c0_i32_0 : i32, i32
  }
  func.func @transform_5(%arg0: i32) -> (i32, i32) {
    %c0_i32 = arith.constant 0 : i32
    %c0_i32_0 = arith.constant 0 : i32
    return %arg0, %c0_i32 : i32, i32
  }
}

</mosaic_0001>

<llo_original>
// kernel: tpu_custom_call.1
$region0: #{tpu_custom_call.1}
  #allocation0 [shape = 'u32[]', space=smem, size = 0x4, offset = 0x4, fixed_abs, tag = 'smem constant byte address 0x4 - core index']
  #allocation1 [shape = 'u32[144,128]{1,0:T(1,128)}', space=vmem, size = 0x12000, scoped, tag = 'internal scratch']
  %s0 = inlined_call_operand.hbm [shape: f32[8,160], index: 0, kind: input, shape index: {}]
  %s1 = inlined_call_operand.hbm [shape: f32[160,128], index: 1, kind: input, shape index: {}]
  %s2 = inlined_call_operand.vmem [shape: f32[1,128], index: 2, kind: input, shape index: {}]
  %s3 = inlined_call_operand.hbm [shape: f32[128,128], index: 3, kind: input, shape index: {}]
  %s4 = inlined_call_operand.vmem [shape: f32[1,128], index: 4, kind: input, shape index: {}]
  %s5 = inlined_call_operand.hbm [shape: f32[8,128], index: 5, kind: output, shape index: {}]
  %s6 = sld [smem:[#allocation0]]
  $region42: #{tpu_custom_call.1} parent=0
    _
  %s8 = ssub.s32 1, %s6
  %s9 = scalar_select 0, %s8, %s6
  $region1: #{tpu_custom_call.1} parent=0
    #allocation2 [shape = 'u8[8192]{0}', space=vmem, size = 0x2000, scoped, tag = 'input window, operand 0, single buffered']
    #allocation3 [shape = 's32[1]{0}', space=sflag, size = 0x4, scoped, tag = 'scoped memory for tpu_custom_call.1']
    #allocation4 [shape = 's32[1]{0}', space=sflag, size = 0x4, scoped, tag = 'scoped memory for tpu_custom_call.1']
    #allocation5 [shape = 'u8[81920]{0}', space=vmem, size = 0x14000, scoped, tag = 'input window, operand 1, single buffered']
    #allocation6 [shape = 's32[1]{0}', space=sflag, size = 0x4, scoped, tag = 'scoped memory for tpu_custom_call.1']
    #allocation7 [shape = 'u8[65536]{0}', space=vmem, size = 0x10000, scoped, tag = 'input window, operand 3, single buffered']
    #allocation8 [shape = 'u8[4096]{0}', space=vmem, size = 0x1000, scoped, tag = 'output window, operand 0, single buffered']
    %10 = vsyncpa [#allocation3], 0
    %11 = vsyncpa [#allocation6], 0
    %12 = vsyncpa [#allocation4], 0
    // Predicated region
    $region2: #{tpu_custom_call.1} parent=1 // pred_check
      _
    $region3: #{tpu_custom_call.1} parent=1 // pred_check_branch
      %14 = sbr.rel (0) target = $region5
    $region4: #{tpu_custom_call.1} parent=1 // pred_region
      %s16 = ssub.s32 256, 256
      %17 = vsyncadd [#allocation3], %s16
      %s19 = sshll.u32 [#allocation2], 4
      %s20 = int_to_ptr.vmem [resolvable:$true] %s19
      %22 = dma.hbm_to_vmem [thread:$0]  %s0, 256, %s20, [#allocation3]
    $region5: #{tpu_custom_call.1} parent=1 // pred_fallthru
      _
    // Predicated region
    $region6: #{tpu_custom_call.1} parent=1 // pred_check
      _
    $region7: #{tpu_custom_call.1} parent=1 // pred_check_branch
      %24 = sbr.rel (0) target = $region9
    $region8: #{tpu_custom_call.1} parent=1 // pred_region
      %s26 = ssub.s32 2560, 2560
      %27 = vsyncadd [#allocation6], %s26
      %s28 = sshll.u32 [#allocation5], 4
      %s29 = int_to_ptr.vmem [resolvable:$true] %s28
      %34 = dma.hbm_to_vmem [thread:$0]  %s1, 2560, %s29, [#allocation6], 128, 128, 8
    $region9: #{tpu_custom_call.1} parent=1 // pred_fallthru
      _
    // Predicated region
    $region10: #{tpu_custom_call.1} parent=1 // pred_check
      _
    $region11: #{tpu_custom_call.1} parent=1 // pred_check_branch
      %36 = sbr.rel (0) target = $region13
    $region12: #{tpu_custom_call.1} parent=1 // pred_region
      _
    $region13: #{tpu_custom_call.1} parent=1 // pred_fallthru
      _
    // Predicated region
    $region14: #{tpu_custom_call.1} parent=1 // pred_check
      _
    $region15: #{tpu_custom_call.1} parent=1 // pred_check_branch
      %38 = sbr.rel (0) target = $region17
    $region16: #{tpu_custom_call.1} parent=1 // pred_region
      %s40 = ssub.s32 2048, 2048
      %41 = vsyncadd [#allocation6], %s40
      %s42 = sshll.u32 [#allocation7], 4
      %s43 = int_to_ptr.vmem [resolvable:$true] %s42
      %48 = dma.hbm_to_vmem [thread:$0]  %s3, 2048, %s43, [#allocation6], 128, 128, 8
    $region17: #{tpu_custom_call.1} parent=1 // pred_fallthru
      _
    // Predicated region
    $region18: #{tpu_custom_call.1} parent=1 // pred_check
      _
    $region19: #{tpu_custom_call.1} parent=1 // pred_check_branch
      %50 = sbr.rel (0) target = $region21
    $region20: #{tpu_custom_call.1} parent=1 // pred_region
      _
    $region21: #{tpu_custom_call.1} parent=1 // pred_fallthru
      _
    // Predicated region
    $region22: #{tpu_custom_call.1} parent=1 // pred_check
      _
    $region23: #{tpu_custom_call.1} parent=1 // pred_check_branch
      %52 = sbr.rel (0) target = $region25
    $region24: #{tpu_custom_call.1} parent=1 // pred_region
      %53 = dma.done [#allocation3], 256
    $region25: #{tpu_custom_call.1} parent=1 // pred_fallthru
      _
    // Predicated region
    $region26: #{tpu_custom_call.1} parent=1 // pred_check
      _
    $region27: #{tpu_custom_call.1} parent=1 // pred_check_branch
      %55 = sbr.rel (0) target = $region29
    $region28: #{tpu_custom_call.1} parent=1 // pred_region
      %56 = dma.done [#allocation6], 2560
    $region29: #{tpu_custom_call.1} parent=1 // pred_fallthru
      _
    // Predicated region
    $region30: #{tpu_custom_call.1} parent=1 // pred_check
      _
    $region31: #{tpu_custom_call.1} parent=1 // pred_check_branch
      %58 = sbr.rel (0) target = $region33
    $region32: #{tpu_custom_call.1} parent=1 // pred_region
      %59 = dma.done [#allocation6], 2048
    $region33: #{tpu_custom_call.1} parent=1 // pred_fallthru
      _
    %v60 = vld [vmem:[#allocation2] sm:$0xff]
    %v61 = vld [vmem:[#allocation2 + $0x8] sm:$0xff]
    %v62 = vld [vmem:[#allocation5] sm:$0xff]
    %v63 = vld [vmem:[#allocation5 + $0x8] sm:$0xff]
    %v64 = vld [vmem:[#allocation5 + $0x10] sm:$0xff]
    %v65 = vld [vmem:[#allocation5 + $0x18] sm:$0xff]
    %v66 = vld [vmem:[#allocation5 + $0x20] sm:$0xff]
    %v67 = vld [vmem:[#allocation5 + $0x28] sm:$0xff]
    %v68 = vld [vmem:[#allocation5 + $0x30] sm:$0xff]
    %v69 = vld [vmem:[#allocation5 + $0x38] sm:$0xff]
    %v70 = vld [vmem:[#allocation5 + $0x40] sm:$0xff]
    %v71 = vld [vmem:[#allocation5 + $0x48] sm:$0xff]
    %v72 = vld [vmem:[#allocation5 + $0x50] sm:$0xff]
    %v73 = vld [vmem:[#allocation5 + $0x58] sm:$0xff]
    %v74 = vld [vmem:[#allocation5 + $0x60] sm:$0xff]
    %v75 = vld [vmem:[#allocation5 + $0x68] sm:$0xff]
    %v76 = vld [vmem:[#allocation5 + $0x70] sm:$0xff]
    %v77 = vld [vmem:[#allocation5 + $0x78] sm:$0xff]
    %v78 = vld [vmem:[#allocation5 + $0x80] sm:$0xff]
    %v79 = vld [vmem:[#allocation5 + $0x88] sm:$0xff]
    %v80 = vld [vmem:[#allocation5 + $0x90] sm:$0xff]
    %v81 = vld [vmem:[#allocation5 + $0x98] sm:$0xff]
    %v82 = vld [vmem:[%s2] sm:$0x1]
    %v84 = vlaneseq
    %v85 = vshrl.u32 %v84, 7
    %v86 = vsub.s32 0, %v85
    %v87 = vrot.slane %v82, %v86
    %vm89 = vcmask 261120
    %v91 = vsel %vm89, %v61, 0
    %93 = vmatprep.subr.mxu0 0.0
    %94 = vmatpush1.msra.mxu0 %v77
    %95 = vmatprep.subr.mxu0 0.0
    %96 = vmatpush1.msra.mxu0 %v76
    %97 = vmatprep.subr.mxu0 0.0
    %98 = vmatpush1.msra.mxu0 %v75
    %99 = vmatprep.subr.mxu0 0.0
    %100 = vmatpush1.msra.mxu0 %v74
    %101 = vmatprep.subr.mxu0 0.0
    %102 = vmatpush1.msra.mxu0 %v73
    %103 = vmatprep.subr.mxu0 0.0
    %104 = vmatpush1.msra.mxu0 %v72
    %105 = vmatprep.subr.mxu0 0.0
    %106 = vmatpush1.msra.mxu0 %v71
    %107 = vmatprep.subr.mxu0 0.0
    %108 = vmatpush1.msra.mxu0 %v70
    %109 = vmatprep.subr.mxu0 0.0
    %110 = vmatpush1.msra.mxu0 %v69
    %111 = vmatprep.subr.mxu0 0.0
    %112 = vmatpush1.msra.mxu0 %v68
    %113 = vmatprep.subr.mxu0 0.0
    %114 = vmatpush1.msra.mxu0 %v67
    %115 = vmatprep.subr.mxu0 0.0
    %116 = vmatpush1.msra.mxu0 %v66
    %117 = vmatprep.subr.mxu0 0.0
    %118 = vmatpush1.msra.mxu0 %v65
    %119 = vmatprep.subr.mxu0 0.0
    %120 = vmatpush1.msra.mxu0 %v64
    %121 = vmatprep.subr.mxu0 0.0
    %122 = vmatpush1.msra.mxu0 %v63
    %123 = vmatprep.subr.mxu0 0.0
    %124 = vmatpush1.msra.mxu0 %v62
    %125 = vmatprep.subr.mxu0 0.0
    %126 = vmatpush2.msra.mxu0 0.0
    %127 = vmatprep.subr.mxu0 0.0
    %128 = vmatpush2.msra.mxu0 0.0
    %129 = vmatprep.subr.mxu0 0.0
    %130 = vmatpush2.msra.mxu0 0.0
    %131 = vmatprep.subr.mxu0 0.0
    %132 = vmatpush2.msra.mxu0 0.0
    %133 = vmatprep.subr.mxu0 0.0
    %134 = vmatpush2.msra.mxu0 0.0
    %135 = vmatprep.subr.mxu0 0.0
    %136 = vmatpush2.msra.mxu0 0.0
    %137 = vmatprep.subr.mxu0 0.0
    %138 = vmatpush2.msra.mxu0 0.0
    %139 = vmatprep.subr.mxu0 0.0
    %140 = vmatpush2.msra.mxu0 0.0
    %141 = vmatprep.subr.mxu0 0.0
    %142 = vmatpush2.msra.mxu0 0.0
    %143 = vmatprep.subr.mxu0 0.0
    %144 = vmatpush2.msra.mxu0 0.0
    %145 = vmatprep.subr.mxu0 0.0
    %146 = vmatpush2.msra.mxu0 0.0
    %147 = vmatprep.subr.mxu0 0.0
    %148 = vmatpush2.msra.mxu0 0.0
    %149 = vmatprep.subr.mxu0 0.0
    %150 = vmatpush2.msra.mxu0 %v81
    %151 = vmatprep.subr.mxu0 0.0
    %152 = vmatpush2.msra.mxu0 %v80
    %153 = vmatprep.subr.mxu0 0.0
    %154 = vmatpush2.msra.mxu0 %v79
    %155 = vmatprep.subr.mxu0 0.0
    %156 = vmatpush2.msra.mxu0 %v78
    %157 = vmatprep.mubr.f32.mxu0 %v91
    %158 = vmatmul.mubr.f32.gmra.mxu0 %v60
    %v159 = vpop.f32.mrf.mxu0
    %v160 = vadd.f32 %v87, %v159
    %v161 = vpop.f32.mrf.mxu0
    %162 = vdwg.mxu0
    %v163 = vtanh.pop %v160
    %v164 = vld [vmem:[#allocation7] sm:$0xff]
    %v165 = vld [vmem:[#allocation7 + $0x8] sm:$0xff]
    %v166 = vld [vmem:[#allocation7 + $0x10] sm:$0xff]
    %v167 = vld [vmem:[#allocation7 + $0x18] sm:$0xff]
    %v168 = vld [vmem:[#allocation7 + $0x20] sm:$0xff]
    %v169 = vld [vmem:[#allocation7 + $0x28] sm:$0xff]
    %v170 = vld [vmem:[#allocation7 + $0x30] sm:$0xff]
    %v171 = vld [vmem:[#allocation7 + $0x38] sm:$0xff]
    %v172 = vld [vmem:[#allocation7 + $0x40] sm:$0xff]
    %v173 = vld [vmem:[#allocation7 + $0x48] sm:$0xff]
    %v174 = vld [vmem:[#allocation7 + $0x50] sm:$0xff]
    %v175 = vld [vmem:[#allocation7 + $0x58] sm:$0xff]
    %v176 = vld [vmem:[#allocation7 + $0x60] sm:$0xff]
    %v177 = vld [vmem:[#allocation7 + $0x68] sm:$0xff]
    %v178 = vld [vmem:[#allocation7 + $0x70] sm:$0xff]
    %v179 = vld [vmem:[#allocation7 + $0x78] sm:$0xff]
    %v180 = vld [vmem:[%s4] sm:$0x1]
    %v182 = vlaneseq
    %v183 = vshrl.u32 %v182, 7
    %v184 = vsub.s32 0, %v183
    %v185 = vrot.slane %v180, %v184
    %187 = vmatprep.subr.mxu0 0.0
    %188 = vmatpush1.msra.mxu0 %v179
    %189 = vmatprep.subr.mxu0 0.0
    %190 = vmatpush1.msra.mxu0 %v178
    %191 = vmatprep.subr.mxu0 0.0
    %192 = vmatpush1.msra.mxu0 %v177
    %193 = vmatprep.subr.mxu0 0.0
    %194 = vmatpush1.msra.mxu0 %v176
    %195 = vmatprep.subr.mxu0 0.0
    %196 = vmatpush1.msra.mxu0 %v175
    %197 = vmatprep.subr.mxu0 0.0
    %198 = vmatpush1.msra.mxu0 %v174
    %199 = vmatprep.subr.mxu0 0.0
    %200 = vmatpush1.msra.mxu0 %v173
    %201 = vmatprep.subr.mxu0 0.0
    %202 = vmatpush1.msra.mxu0 %v172
    %203 = vmatprep.subr.mxu0 0.0
    %204 = vmatpush1.msra.mxu0 %v171
    %205 = vmatprep.subr.mxu0 0.0
    %206 = vmatpush1.msra.mxu0 %v170
    %207 = vmatprep.subr.mxu0 0.0
    %208 = vmatpush1.msra.mxu0 %v169
    %209 = vmatprep.subr.mxu0 0.0
    %210 = vmatpush1.msra.mxu0 %v168
    %211 = vmatprep.subr.mxu0 0.0
    %212 = vmatpush1.msra.mxu0 %v167
    %213 = vmatprep.subr.mxu0 0.0
    %214 = vmatpush1.msra.mxu0 %v166
    %215 = vmatprep.subr.mxu0 0.0
    %216 = vmatpush1.msra.mxu0 %v165
    %217 = vmatprep.subr.mxu0 0.0
    %218 = vmatpush1.msra.mxu0 %v164
    %219 = vmatprep.subr.mxu0 0.0
    %220 = vmatpush2.msra.mxu0 0.0
    %221 = vmatprep.subr.mxu0 0.0
    %222 = vmatpush2.msra.mxu0 0.0
    %223 = vmatprep.subr.mxu0 0.0
    %224 = vmatpush2.msra.mxu0 0.0
    %225 = vmatprep.subr.mxu0 0.0
    %226 = vmatpush2.msra.mxu0 0.0
    %227 = vmatprep.subr.mxu0 0.0
    %228 = vmatpush2.msra.mxu0 0.0
    %229 = vmatprep.subr.mxu0 0.0
    %230 = vmatpush2.msra.mxu0 0.0
    %231 = vmatprep.subr.mxu0 0.0
    %232 = vmatpush2.msra.mxu0 0.0
    %233 = vmatprep.subr.mxu0 0.0
    %234 = vmatpush2.msra.mxu0 0.0
    %235 = vmatprep.subr.mxu0 0.0
    %236 = vmatpush2.msra.mxu0 0.0
    %237 = vmatprep.subr.mxu0 0.0
    %238 = vmatpush2.msra.mxu0 0.0
    %239 = vmatprep.subr.mxu0 0.0
    %240 = vmatpush2.msra.mxu0 0.0
    %241 = vmatprep.subr.mxu0 0.0
    %242 = vmatpush2.msra.mxu0 0.0
    %243 = vmatprep.subr.mxu0 0.0
    %244 = vmatpush2.msra.mxu0 0.0
    %245 = vmatprep.subr.mxu0 0.0
    %246 = vmatpush2.msra.mxu0 0.0
    %247 = vmatprep.subr.mxu0 0.0
    %248 = vmatpush2.msra.mxu0 0.0
    %249 = vmatprep.subr.mxu0 0.0
    %250 = vmatpush2.msra.mxu0 0.0
    %251 = vmatprep.mubr.f32.mxu0 0.0
    %252 = vmatmul.mubr.f32.gmra.mxu0 %v163
    %v253 = vpop.f32.mrf.mxu0
    %v254 = vadd.f32 %v185, %v253
    %v255 = vpop.f32.mrf.mxu0
    %256 = vdwg.mxu0
    %257 = vst [vmem:[#allocation8] sm:$0xff] %v254
    // Predicated region
    $region34: #{tpu_custom_call.1} parent=1 // pred_check
      _
    $region35: #{tpu_custom_call.1} parent=1 // pred_check_branch
      %259 = sbr.rel (0) target = $region37
    $region36: #{tpu_custom_call.1} parent=1 // pred_region
      %s261 = ssub.s32 128, 128
      %262 = vsyncadd [#allocation4], %s261
      %s264 = sshll.u32 [#allocation8], 4
      %s265 = int_to_ptr.vmem [resolvable:$true] %s264
      %267 = dma.vmem_to_hbm [thread:$0]  %s265, 128, %s5, [#allocation4]
    $region37: #{tpu_custom_call.1} parent=1 // pred_fallthru
      _
    // Predicated region
    $region38: #{tpu_custom_call.1} parent=1 // pred_check
      _
    $region39: #{tpu_custom_call.1} parent=1 // pred_check_branch
      %269 = sbr.rel (0) target = $region41
    $region40: #{tpu_custom_call.1} parent=1 // pred_region
      %270 = dma.done [#allocation4], 128
    $region41: #{tpu_custom_call.1} parent=1 // pred_fallthru
      _
    %271 = vsyncpa [#allocation3], 1
    %272 = vsyncpa [#allocation6], 1
    %273 = vsyncpa [#allocation4], 1

</llo_original>
